<compile_context>
chip_gen: v6e
topology: v6e:2x2x1
jax: 0.10.0
libtpu: 0.0.40
codegen_flags: <defaults>
</compile_context>

<pallas_src>
import math

import jax
import jax.numpy as jnp
from jax.experimental import pallas as pl
from jax.experimental.pallas import tpu as pltpu


# ----------------------------------------------------------------------------
# Kernel: pure broadcast-multiply.  x block (nb, C, hb), filt block (G, 1, hb),
# out block (nb, G, C, hb).  No relayouts: the x broadcast only inserts a
# leading-ish dim, the filt broadcast is a supported sublane broadcast.
# ----------------------------------------------------------------------------
def _igabor_modulate_kernel(x_ref, filt_ref, out_ref):
    x = x_ref[...].astype(jnp.float32)          # (nb, C, hb)
    f = filt_ref[...]                           # (G, 1, hb), float32
    out = x[:, None, :, :] * f[None, :, :, :]   # (nb, G, C, hb)
    out_ref[...] = out.astype(out_ref.dtype)


# ----------------------------------------------------------------------------
# Host-side (plain JAX) Gabor bank — mirrors gabor()/norm() of the module.
# It is tiny (G*H*W), so generating it outside the kernel is the right call.
# ----------------------------------------------------------------------------
def _gabor_bank(theta, lambd, H, W):
    G = theta.shape[0]
    ys = jnp.arange(-H / 2, H / 2, dtype=jnp.float32) + 0.5
    xs = jnp.arange(-W / 2, W / 2, dtype=jnp.float32) + 0.5
    yy, xx = jnp.meshgrid(ys, xs, indexing="ij")
    th = theta.reshape(G, 1, 1).astype(jnp.float32)
    lb = lambd.reshape(G, 1, 1).astype(jnp.float32)
    x_p = jnp.cos(th) * xx + jnp.sin(th) * yy                       # x_prime
    env = jnp.exp(-(xx * xx + yy * yy) / (2.0 * (math.pi + 1e-5) ** 2))  # f_h
    g = env * jnp.cos(2.0 * math.pi / lb * x_p)                     # f_h * s_h
    g = (g - jnp.min(g)) / (jnp.max(g) - jnp.min(g) + 1e-12)        # norm()
    return g.reshape(G, 1, H * W)                                   # (G, 1, HW) f32


# ----------------------------------------------------------------------------
# Wrapper: IGabor.forward (training path)
# ----------------------------------------------------------------------------
def igabor_forward(x, theta, lambd, layer=False, *, vmem_budget_bytes=32 * 1024 * 1024):
    N, C, H, W = x.shape
    G = theta.shape[0]
    HW = H * W
    out_dtype = x.dtype

    filt = _gabor_bank(theta, lambd, H, W)      # (G, 1, HW), tiny, plain JAX
    x3 = x.reshape(N, C, HW)                    # contiguous (free) view, native dtype

    x_bytes = x.dtype.itemsize
    o_bytes = jnp.dtype(out_dtype).itemsize
    c_pad = -(-C // 8) * 8                      # sublane padding of (C, hw) tiles

    def block_bytes(nb, hb):
        xb = nb * c_pad * hb * x_bytes              # x block     (nb, C, hb)
        ob = nb * G * c_pad * hb * o_bytes          # out block   (nb, G, C, hb)
        fb = G * 8 * hb * 4                         # filt block  (G, 1, hb)
        return 2 * (xb + ob + fb)                   # double-buffered pipeline

    # Spatial (lane) block: full HW unless a single batch row exceeds the budget;
    # only split when HW is 128-aligned so stores stay unmasked.
    hb = HW
    if HW % 128 == 0:
        while hb > 128 and block_bytes(1, hb) > vmem_budget_bytes:
            hb = max(128, (hb // 2) // 128 * 128)
    n_hw = pl.cdiv(HW, hb)

    # Batch block: as big as the budget allows, but keep >= 2 grid steps so both
    # v7x TensorCores get work and the writeback DMA overlaps the next step.
    per_n = max(1, block_bytes(1, hb))
    nb = max(1, min(N, vmem_budget_bytes // per_n))
    if n_hw == 1 and N >= 2:
        nb = min(nb, max(1, N // 2))
    grid = (pl.cdiv(N, nb), n_hw)

    vmem_limit = int(min(max(block_bytes(nb, hb) + (8 << 20), 32 << 20), 112 << 20))

    cost = pl.CostEstimate(
        flops=N * G * C * HW,
        transcendentals=0,
        bytes_accessed=N * C * HW * x_bytes + N * G * C * HW * o_bytes + G * HW * 4,
    )

    out = pl.pallas_call(
        _igabor_modulate_kernel,
        out_shape=jax.ShapeDtypeStruct((N, G, C, HW), out_dtype),
        grid=grid,
        in_specs=[
            pl.BlockSpec((nb, C, hb), lambda i, j: (i, 0, j)),      # x batch/spatial tile
            pl.BlockSpec((G, 1, hb), lambda i, j: (0, 0, j)),       # filt (resident over i)
        ],
        out_specs=pl.BlockSpec((nb, G, C, hb), lambda i, j: (i, 0, 0, j)),
        compiler_params=pltpu.CompilerParams(
            dimension_semantics=("parallel", "parallel"),
            vmem_limit_bytes=vmem_limit,
        ),
        cost_estimate=cost,
    )(x3, filt)

    if layer:
        # memory order (n, g, c, h, w) -> channel index g*C + c
        return out.reshape(N, G * C, H, W)
    return out.reshape(N * G, C, H, W)


# ----------------------------------------------------------------------------
# Pure-JAX reference (correctness check only)
# ----------------------------------------------------------------------------
def _reference(x, theta, lambd, layer=False):
    N, C, H, W = x.shape
    G = theta.shape[0]
    ys = jnp.arange(-H / 2, H / 2, dtype=jnp.float32) + 0.5
    xs = jnp.arange(-W / 2, W / 2, dtype=jnp.float32) + 0.5
    yy, xx = jnp.meshgrid(ys, xs, indexing="ij")
    th = theta.reshape(G, 1, 1).astype(jnp.float32)
    lb = lambd.reshape(G, 1, 1).astype(jnp.float32)
    x_p = jnp.cos(th) * xx + jnp.sin(th) * yy
    env = jnp.exp(-(xx * xx + yy * yy) / (2.0 * (math.pi + 1e-5) ** 2))
    g = env * jnp.cos(2.0 * math.pi / lb * x_p)
    g = (g - g.min()) / (g.max() - g.min() + 1e-12)
    out = (g[None, :, None, :, :] * x.astype(jnp.float32)[:, None, :, :, :]).astype(x.dtype)
    if layer:
        return out.reshape(N, G * C, H, W)
    return out.reshape(N * G, C, H, W)


if __name__ == "__main__":
    no_g = 4
    N, C, H, W = 2, 4, 16, 16

    key = jax.random.PRNGKey(0)
    k_x, k_lambd = jax.random.split(key)

    # Parameter init as in IGabor.__init__:
    #   params[0] = arange(no_g) / no_g * pi          (theta)
    #   params[1] ~ U(-1/sqrt(no_g), 1/sqrt(no_g))    (lambd)
    theta = jnp.arange(no_g, dtype=jnp.float32) / no_g * math.pi
    bound = 1.0 / math.sqrt(no_g)
    lambd = jax.random.uniform(
        k_lambd, (no_g,), dtype=jnp.float32, minval=-bound, maxval=bound
    )

    x = jax.random.normal(k_x, (N, C, H, W), dtype=jnp.float32)

    out = jax.block_until_ready(igabor_forward(x, theta, lambd, layer=False))
    ref = _reference(x, theta, lambd, layer=False)
    assert out.shape == (N * no_g, C, H, W), out.shape
    assert jnp.allclose(out, ref, atol=1e-5, rtol=1e-5), "mismatch vs reference"

    out_l = jax.block_until_ready(igabor_forward(x, theta, lambd, layer=True))
    ref_l = _reference(x, theta, lambd, layer=True)
    assert out_l.shape == (N, C * no_g, H, W), out_l.shape
    assert jnp.allclose(out_l, ref_l, atol=1e-5, rtol=1e-5), "mismatch vs reference"

    print("KERNEL_OK")
</pallas_src>

<mosaic_0001>
module attributes {stable_mosaic.version = 11 : i64} {
  func.func @_igabor_modulate_kernel(%arg0: i32, %arg1: i32, %arg2: memref<1x4x256xf32, #tpu.memory_space<vmem>>, %arg3: memref<4x1x256xf32, #tpu.memory_space<vmem>>, %arg4: memref<1x4x4x256xf32, #tpu.memory_space<vmem>>) attributes {dimension_semantics = [#tpu.dimension_semantics<parallel>, #tpu.dimension_semantics<parallel>], iteration_bounds = array<i64: 2, 1>, scalar_prefetch = 0 : i64, scratch_operands = 0 : i64, tpu.core_type = #tpu.core_type<tc>, window_params = [{transform_indices = @transform_0, window_bounds = array<i64: 1, 4, 256>}, {transform_indices = @transform_1, window_bounds = array<i64: 4, 1, 256>}, {transform_indices = @transform_2, window_bounds = array<i64: 1, 4, 4, 256>}]} {
    %c0 = arith.constant 0 : index
    %c0_0 = arith.constant 0 : index
    %c0_1 = arith.constant 0 : index
    %0 = vector.load %arg2[%c0, %c0_0, %c0_1] : memref<1x4x256xf32, #tpu.memory_space<vmem>>, vector<1x4x256xf32>
    %c0_2 = arith.constant 0 : index
    %c0_3 = arith.constant 0 : index
    %c0_4 = arith.constant 0 : index
    %1 = vector.load %arg3[%c0_2, %c0_3, %c0_4] : memref<4x1x256xf32, #tpu.memory_space<vmem>>, vector<4x1x256xf32>
    %2 = vector.shape_cast %0 : vector<1x4x256xf32> to vector<1x1x4x256xf32>
    %3 = vector.shape_cast %1 : vector<4x1x256xf32> to vector<1x4x1x256xf32>
    %4 = vector.broadcast %2 : vector<1x1x4x256xf32> to vector<1x4x4x256xf32>
    %5 = vector.broadcast %3 : vector<1x4x1x256xf32> to vector<1x4x4x256xf32>
    %6 = arith.mulf %4, %5 : vector<1x4x4x256xf32>
    %c0_5 = arith.constant 0 : index
    %c0_6 = arith.constant 0 : index
    %c0_7 = arith.constant 0 : index
    %c0_8 = arith.constant 0 : index
    %7 = vector.load %arg4[%c0_5, %c0_6, %c0_7, %c0_8] : memref<1x4x4x256xf32, #tpu.memory_space<vmem>>, vector<1x4x4x256xf32>
    tpu.vector_store %arg4[%c0_5, %c0_6, %c0_7, %c0_8], %6 {strides = array<i32>} : memref<1x4x4x256xf32, #tpu.memory_space<vmem>>, vector<1x4x4x256xf32>,
    return
  }
  func.func @transform_0(%arg0: i32, %arg1: i32) -> (i32, i32, i32) {
    %c0_i32 = arith.constant 0 : i32
    %c0_i32_0 = arith.constant 0 : i32
    return %arg0, %c0_i32, %arg1 : i32, i32, i32
  }
  func.func @transform_1(%arg0: i32, %arg1: i32) -> (i32, i32, i32) {
    %c0_i32 = arith.constant 0 : i32
    %c0_i32_0 = arith.constant 0 : i32
    %c0_i32_1 = arith.constant 0 : i32
    return %c0_i32, %c0_i32_0, %arg1 : i32, i32, i32
  }
  func.func @transform_2(%arg0: i32, %arg1: i32) -> (i32, i32, i32, i32) {
    %c0_i32 = arith.constant 0 : i32
    %c0_i32_0 = arith.constant 0 : i32
    %c0_i32_1 = arith.constant 0 : i32
    return %arg0, %c0_i32, %c0_i32_0, %arg1 : i32, i32, i32, i32
  }
}

</mosaic_0001>

<llo_original>
// kernel: tpu_custom_call.1
$region0: #{tpu_custom_call.1}
  #allocation0 [shape = 'u32[]', space=smem, size = 0x4, offset = 0x4, fixed_abs, tag = 'smem constant byte address 0x4 - core index']
  #allocation1 [shape = 'u32[144,128]{1,0:T(1,128)}', space=vmem, size = 0x12000, scoped, tag = 'internal scratch']
  %s0 = inlined_call_operand.hbm [shape: f32[2,4,256], index: 0, kind: input, shape index: {}]
  %s1 = inlined_call_operand.hbm [shape: f32[4,1,256], index: 1, kind: input, shape index: {}]
  %s2 = inlined_call_operand.hbm [shape: f32[2,4,4,256], index: 2, kind: output, shape index: {}]
  %s3 = sld [smem:[#allocation0]]
  $region49: #{tpu_custom_call.1} parent=0
    _
  %s5 = ssub.s32 1, %s3
  %s6 = scalar_select 0, %s5, %s3
  $region1: #{tpu_custom_call.1} parent=0
    #allocation2 [shape = 'u8[8192]{0}', space=vmem, size = 0x2000, scoped, tag = 'input window, operand 0']
    #allocation3 [shape = 's32[2]{0}', space=sflag, size = 0x8, scoped, tag = 'scoped memory for tpu_custom_call.1']
    #allocation4 [shape = 's32[2]{0}', space=sflag, size = 0x8, scoped, tag = 'scoped memory for tpu_custom_call.1']
    #allocation5 [shape = 'u8[4096]{0}', space=vmem, size = 0x1000, scoped, tag = 'input window, operand 1, single buffered']
    #allocation6 [shape = 's32[1]{0}', space=sflag, size = 0x4, scoped, tag = 'scoped memory for tpu_custom_call.1']
    #allocation7 [shape = 'u8[32768]{0}', space=vmem, size = 0x8000, scoped, tag = 'output window, operand 0']
    %7 = vsyncpa [#allocation3], 0
    %s8 = scalar_lea.sflag [#allocation3], 1
    %9 = vsyncpa %s8, 0
    %10 = vsyncpa [#allocation6], 0
    %11 = vsyncpa [#allocation4], 0
    %s12 = scalar_lea.sflag [#allocation4], 1
    %13 = vsyncpa %s12, 0
    loop: start=0, step=1, limit=4
    $region2: #{tpu_custom_call.1} parent=1 // loop_pre_header
      _
    $region3: #{tpu_custom_call.1} parent=1 // loop_header
      %s15 = sphi 0, %s19
      %p16 = scmp.ge.s32.totalorder %s15, 4
      %s22 = sphi 0, %s34
      %s23 = sphi 0, %s30
      %s24 = sphi 0, %s22
      %s25 = sphi 0, %s23
      %s26 = sphi 0, %s24
      %s27 = sphi 0, %s25
      %s39 = sphi 0, %s41
      %s42 = sphi 0, %s39
      %s43 = sphi 0, %s42
      %s59 = sphi 0, %s43
      %s65 = sphi 0, %s67
      %s68 = sphi 0, %s65
      %s69 = sphi 0, %s68
      %s85 = sphi 0, %s69
      %s93 = sphi 0, %s95
      %s96 = sphi 0, %s93
      %s97 = sphi 0, %s96
      %s113 = sphi 0, %s97
    $region4: #{tpu_custom_call.1} parent=1 // loop_header_branch
      %18 = sbr.rel (%p16) target = $region8
    $region5: #{tpu_custom_call.1} parent=1 // loop_body
      %s20 = ssub.s32 %s15, 1
      %s21 = ssub.s32 %s15, 2
      %s28 = sadd.s32 1, %s23
      %p29 = scmp.ge.s32.totalorder %s28, 1
      %s30 = scalar_select %p29, 0, %s28
      %s31 = sadd.s32 1, %s22
      %s32 = scalar_select %p29, %s31, %s22
      %p33 = scmp.ge.s32.totalorder %s32, 2
      %s34 = scalar_select %p33, 0, %s32
      %s35 = ssub.s32 %s22, %s34
      %s36 = ssub.s32 %s23, %s30
      %s37 = sor.u32 %s35, %s36
      %p38 = scmp.eq.s32.totalorder %s37, 0
      %s40 = sadd.s32 %s39, 1
      %s41 = scalar_select %p38, %s39, %s40
      %p44 = pneg %p38
      %p45 = scmp.eq.s32.totalorder %s15, 1
      %p46 = por %p44, %p45
      %p47 = scmp.ne.s32.totalorder %s39, %s42
      %p48 = scmp.eq.s32.totalorder %s15, 0
      %p49 = por %p47, %p48
      %p50 = scmp.ne.s32.totalorder %s39, %s42
      %p51 = scmp.eq.s32.totalorder %s20, 1
      %p52 = por %p50, %p51
      %p53 = scmp.ne.s32.totalorder %s42, %s43
      %p54 = scmp.eq.s32.totalorder %s20, 0
      %p55 = por %p53, %p54
      %p56 = scmp.ne.s32.totalorder %s42, %s43
      %p57 = scmp.eq.s32.totalorder %s21, 1
      %p58 = por %p56, %p57
      %p60 = scmp.ne.s32.totalorder %s43, %s59
      %p61 = scmp.eq.s32.totalorder %s21, 0
      %p62 = por %p60, %p61
      %s63 = ssub.s32 %s23, %s30
      %p64 = scmp.eq.s32.totalorder %s63, 0
      %s66 = sadd.s32 %s65, 1
      %s67 = scalar_select %p64, %s65, %s66
      %p70 = pneg %p64
      %p71 = scmp.eq.s32.totalorder %s15, 1
      %p72 = por %p70, %p71
      %p73 = scmp.ne.s32.totalorder %s65, %s68
      %p74 = scmp.eq.s32.totalorder %s15, 0
      %p75 = por %p73, %p74
      %p76 = scmp.ne.s32.totalorder %s65, %s68
      %p77 = scmp.eq.s32.totalorder %s20, 1
      %p78 = por %p76, %p77
      %p79 = scmp.ne.s32.totalorder %s68, %s69
      %p80 = scmp.eq.s32.totalorder %s20, 0
      %p81 = por %p79, %p80
      %p82 = scmp.ne.s32.totalorder %s68, %s69
      %p83 = scmp.eq.s32.totalorder %s21, 1
      %p84 = por %p82, %p83
      %p86 = scmp.ne.s32.totalorder %s69, %s85
      %p87 = scmp.eq.s32.totalorder %s21, 0
      %p88 = por %p86, %p87
      %s89 = ssub.s32 %s22, %s34
      %s90 = ssub.s32 %s23, %s30
      %s91 = sor.u32 %s89, %s90
      %p92 = scmp.eq.s32.totalorder %s91, 0
      %s94 = sadd.s32 %s93, 1
      %s95 = scalar_select %p92, %s93, %s94
      %p98 = pneg %p92
      %p99 = scmp.eq.s32.totalorder %s15, 1
      %p100 = por %p98, %p99
      %p101 = scmp.ne.s32.totalorder %s93, %s96
      %p102 = scmp.eq.s32.totalorder %s15, 0
      %p103 = por %p101, %p102
      %p104 = scmp.ne.s32.totalorder %s93, %s96
      %p105 = scmp.eq.s32.totalorder %s20, 1
      %p106 = por %p104, %p105
      %p107 = scmp.ne.s32.totalorder %s96, %s97
      %p108 = scmp.eq.s32.totalorder %s20, 0
      %p109 = por %p107, %p108
      %p110 = scmp.ne.s32.totalorder %s96, %s97
      %p111 = scmp.eq.s32.totalorder %s21, 1
      %p112 = por %p110, %p111
      %p114 = scmp.ne.s32.totalorder %s97, %s113
      %p115 = scmp.eq.s32.totalorder %s21, 0
      %p116 = por %p114, %p115
      %p117 = scmp.le.s32.totalorder 1, %s15
      %p118 = scmp.lt.s32.totalorder %s15, 3
      %p119 = pnand %p117, %p118
      %p120 = pneg %p119
      // Predicated region
      $region9: #{tpu_custom_call.1} parent=5 // pred_check
        _
      $region10: #{tpu_custom_call.1} parent=5 // pred_check_branch
        %122 = sbr.rel (%p119) target = $region12
      $region11: #{tpu_custom_call.1} parent=5 // pred_region
        %s123 = ssub.s32 %s15, 1
        // Predicated region
        $region13: #{tpu_custom_call.1} parent=11 // pred_check
          %p124 = pneg %p81
        $region14: #{tpu_custom_call.1} parent=11 // pred_check_branch
          %126 = sbr.rel (%p124) target = $region16
        $region15: #{tpu_custom_call.1} parent=11 // pred_region
          %s127 = smul.u32 2, %s25
          %s129 = ssub.s32 128, 128
          %130 = vsyncadd [#allocation6], %s129
          %s131 = smul.addr %s127, 16
          %s132 = scalar_lea.hbm %s1, %s131
          %s133 = sshll.u32 [#allocation5], 4
          %s134 = int_to_ptr.vmem [resolvable:$true] %s133
          %139 = dma.hbm_to_vmem [thread:$0]  %s132, 128, %s134, [#allocation6], 32, 32, 2
        $region16: #{tpu_custom_call.1} parent=11 // pred_fallthru
          _
      $region12: #{tpu_custom_call.1} parent=5 // pred_fallthru
        _
      %p140 = scmp.lt.s32.totalorder %s15, 2
      // Predicated region
      $region17: #{tpu_custom_call.1} parent=5 // pred_check
        %p141 = pneg %p140
      $region18: #{tpu_custom_call.1} parent=5 // pred_check_branch
        %143 = sbr.rel (%p141) target = $region20
      $region19: #{tpu_custom_call.1} parent=5 // pred_region
        // Predicated region
        $region21: #{tpu_custom_call.1} parent=19 // pred_check
          %p144 = pneg %p49
        $region22: #{tpu_custom_call.1} parent=19 // pred_check_branch
          %146 = sbr.rel (%p144) target = $region24
        $region23: #{tpu_custom_call.1} parent=19 // pred_region
          %s147 = sand.u32 %s39, 1
          %s148 = scalar_lea.sflag [#allocation3], %s147
          %s149 = sand.u32 %s39, 1
          %s150 = smul.addr %s149, 8
          %s151 = scalar_lea.vmem [#allocation2], %s150
          %s152 = smul.u32 2, %s23
          %s154 = ssub.s32 128, 128
          %155 = vsyncadd %s148, %s154
          %s156 = smul.addr %s22, 2
          %s157 = sadd.s32 %s152, %s156
          %s158 = smul.addr %s157, 64
          %s159 = scalar_lea.hbm %s0, %s158
          %s161 = sshll.u32 %s151, 4
          %s162 = int_to_ptr.vmem [resolvable:$true] %s161
          %164 = dma.hbm_to_vmem [thread:$0]  %s159, 128, %s162, %s148
        $region24: #{tpu_custom_call.1} parent=19 // pred_fallthru
          _
      $region20: #{tpu_custom_call.1} parent=5 // pred_fallthru
        _
      %p165 = scmp.le.s32.totalorder 1, %s15
      %p166 = scmp.lt.s32.totalorder %s15, 3
      %p167 = pnand %p165, %p166
      %p168 = pneg %p167
      // Predicated region
      $region25: #{tpu_custom_call.1} parent=5 // pred_check
        _
      $region26: #{tpu_custom_call.1} parent=5 // pred_check_branch
        %170 = sbr.rel (%p167) target = $region28
      $region27: #{tpu_custom_call.1} parent=5 // pred_region
        %s171 = ssub.s32 %s15, 1
        %s172 = sand.u32 %s42, 1
        %s173 = scalar_lea.sflag [#allocation3], %s172
        %s174 = sand.u32 %s42, 1
        %s175 = smul.addr %s174, 8
        %s176 = scalar_lea.vmem [#allocation2], %s175
        // Predicated region
        $region29: #{tpu_custom_call.1} parent=27 // pred_check
          %p177 = pneg %p55
        $region30: #{tpu_custom_call.1} parent=27 // pred_check_branch
          %179 = sbr.rel (%p177) target = $region32
        $region31: #{tpu_custom_call.1} parent=27 // pred_region
          %180 = dma.done %s173, 128
        $region32: #{tpu_custom_call.1} parent=27 // pred_fallthru
          _
        // Predicated region
        $region33: #{tpu_custom_call.1} parent=27 // pred_check
          %p181 = pneg %p81
        $region34: #{tpu_custom_call.1} parent=27 // pred_check_branch
          %183 = sbr.rel (%p181) target = $region36
        $region35: #{tpu_custom_call.1} parent=27 // pred_region
          %184 = dma.done [#allocation6], 128
        $region36: #{tpu_custom_call.1} parent=27 // pred_fallthru
          _
        %s185 = sand.u32 %s42, 1
        %s186 = scalar_lea.sflag [#allocation3], %s185
        %s187 = sand.u32 %s42, 1
        %s188 = smul.addr %s187, 8
        %s189 = scalar_lea.vmem [#allocation2], %s188
        %p190 = pneg %p55
        %p191 = pneg %p52
        %p192 = pneg %p81
        %p193 = pneg %p78
        %p194 = pneg %p109
        %p195 = pneg %p106
        %s196 = sand.u32 %s96, 1
        %s197 = scalar_lea.sflag [#allocation4], %s196
        %s198 = sand.u32 %s96, 1
        %s199 = smul.addr %s198, 32
        %s200 = scalar_lea.vmem [#allocation7], %s199
        %s201 = smul.u32 2, %s25
        %s202 = smul.u32 2, %s25
        %s203 = smul.u32 2, %s25
        %v204 = vld [vmem:[%s176] sm:$0xff]
        %v205 = vld [vmem:[#allocation5] sm:$0x3]
        %v206 = vld [vmem:[#allocation5 + $0x2] sm:$0x3]
        %v207 = vld [vmem:[#allocation5 + $0x4] sm:$0x3]
        %v208 = vld [vmem:[#allocation5 + $0x6] sm:$0x3]
        %v213 = vlaneseq
        %v214 = vshrl.u32 %v213, 7
        %v215 = vsub.s32 0, %v214
        %v216 = vrot.slane %v205, %v215
        %v217 = vlaneseq
        %v218 = vshrl.u32 %v217, 7
        %v219 = vsub.s32 1, %v218
        %v220 = vrot.slane %v205, %v219
        %v221 = vlaneseq
        %v222 = vshrl.u32 %v221, 7
        %v223 = vsub.s32 0, %v222
        %v224 = vrot.slane %v206, %v223
        %v225 = vlaneseq
        %v226 = vshrl.u32 %v225, 7
        %v227 = vsub.s32 1, %v226
        %v228 = vrot.slane %v206, %v227
        %v229 = vlaneseq
        %v230 = vshrl.u32 %v229, 7
        %v231 = vsub.s32 0, %v230
        %v232 = vrot.slane %v207, %v231
        %v233 = vlaneseq
        %v234 = vshrl.u32 %v233, 7
        %v235 = vsub.s32 1, %v234
        %v236 = vrot.slane %v207, %v235
        %v237 = vlaneseq
        %v238 = vshrl.u32 %v237, 7
        %v239 = vsub.s32 0, %v238
        %v240 = vrot.slane %v208, %v239
        %v241 = vlaneseq
        %v242 = vshrl.u32 %v241, 7
        %v243 = vsub.s32 1, %v242
        %v244 = vrot.slane %v208, %v243
        %v245 = vcombine.low %v216, %v220
        %v246 = vcombine.low %v224, %v228
        %v247 = vcombine.low %v232, %v236
        %v248 = vcombine.low %v240, %v244
        %v253 = vmul.f32 %v204, %v245
        %v254 = vmul.f32 %v204, %v246
        %v255 = vmul.f32 %v204, %v247
        %v256 = vmul.f32 %v204, %v248
        %257 = vst [vmem:[%s200] sm:$0xff] %v253
        %258 = vst [vmem:[%s200 + $0x8] sm:$0xff] %v254
        %259 = vst [vmem:[%s200 + $0x10] sm:$0xff] %v255
        %260 = vst [vmem:[%s200 + $0x18] sm:$0xff] %v256
        %s261 = sand.u32 %s96, 1
        %s262 = scalar_lea.sflag [#allocation4], %s261
        %s263 = sand.u32 %s96, 1
        %s264 = smul.addr %s263, 32
        %s265 = scalar_lea.vmem [#allocation7], %s264
        // Predicated region
        $region37: #{tpu_custom_call.1} parent=27 // pred_check
          %p266 = pneg %p106
        $region38: #{tpu_custom_call.1} parent=27 // pred_check_branch
          %268 = sbr.rel (%p266) target = $region40
        $region39: #{tpu_custom_call.1} parent=27 // pred_region
          %s269 = smul.u32 2, %s25
          %s271 = ssub.s32 512, 512
          %272 = vsyncadd %s262, %s271
          %s273 = smul.addr %s24, 8
          %s274 = sadd.s32 %s269, %s273
          %s275 = smul.addr %s274, 64
          %s276 = scalar_lea.hbm %s2, %s275
          %s277 = sshll.u32 %s265, 4
          %s278 = int_to_ptr.vmem [resolvable:$true] %s277
          %283 = dma.vmem_to_hbm [thread:$0]  %s278, 512, %s276, %s262, 128, 128, 8
        $region40: #{tpu_custom_call.1} parent=27 // pred_fallthru
          _
      $region28: #{tpu_custom_call.1} parent=5 // pred_fallthru
        _
      %p284 = scmp.le.s32.totalorder 2, %s15
      // Predicated region
      $region41: #{tpu_custom_call.1} parent=5 // pred_check
        %p285 = pneg %p284
      $region42: #{tpu_custom_call.1} parent=5 // pred_check_branch
        %287 = sbr.rel (%p285) target = $region44
      $region43: #{tpu_custom_call.1} parent=5 // pred_region
        %s288 = ssub.s32 %s15, 2
        // Predicated region
        $region45: #{tpu_custom_call.1} parent=43 // pred_check
          %p289 = pneg %p112
        $region46: #{tpu_custom_call.1} parent=43 // pred_check_branch
          %291 = sbr.rel (%p289) target = $region48
        $region47: #{tpu_custom_call.1} parent=43 // pred_region
          %s292 = sand.u32 %s97, 1
          %s293 = scalar_lea.sflag [#allocation4], %s292
          %s294 = sand.u32 %s97, 1
          %s295 = smul.addr %s294, 32
          %s296 = scalar_lea.vmem [#allocation7], %s295
          %297 = dma.done %s293, 512
        $region48: #{tpu_custom_call.1} parent=43 // pred_fallthru
          _
      $region44: #{tpu_custom_call.1} parent=5 // pred_fallthru
        _
    $region6: #{tpu_custom_call.1} parent=1 // loop_footer
      %s19 = sadd.s32 1, %s15
    $region7: #{tpu_custom_call.1} parent=1 // loop_footer_branch
      %14 = sbr.rel target = $region3
    $region8: #{tpu_custom_call.1} parent=1 // loop_exit
      _
    %298 = vsyncpa [#allocation3], 1
    %s299 = scalar_lea.sflag [#allocation3], 1
    %300 = vsyncpa %s299, 1
    %301 = vsyncpa [#allocation6], 1
    %302 = vsyncpa [#allocation4], 1
    %s303 = scalar_lea.sflag [#allocation4], 1
    %304 = vsyncpa %s303, 1

</llo_original>
